<compile_context>
chip_gen: v6e
topology: v6e:2x2x1
jax: 0.10.0
libtpu: 0.0.40
codegen_flags: <defaults>
</compile_context>

<pallas_src>
import functools
import math

import jax
import jax.numpy as jnp
from jax import lax
from jax.experimental import pallas as pl
from jax.experimental.pallas import tpu as pltpu

_LANES = 128        # lane width (last dim of every block)
_ROW_ALIGN = 16     # bf16 packs (16, 128) per vreg -> keep row tiles 16-aligned
_MAX_UNROLL = 16    # static unroll limit for the dint FMA chain
_MAX_TILE_ROWS = 8192


def _round_up(x, m):
    return ((x + m - 1) // m) * m


def _cdiv(a, b):
    return -(-a // b)


def _tpu_vmem_bytes():
    """Physical VMEM capacity; conservative 64 MiB (v7x per-TC) fallback."""
    try:
        return int(pltpu.get_tpu_info().vmem_capacity_bytes)
    except Exception:
        return 64 * 1024 * 1024


def _plan_layout(n_elems, dint, p_bytes, base_bytes):
    """Pick (tile_r, rows_pad) for a (rows_pad, 128) lane-dense layout.

    tile_r is a multiple of 16, chosen so the double-buffered working set
    (2 x (P^T tile + base tile + out tile)) targets ~40% of physical VMEM:
    ~25 MiB on v7x (64 MiB VMEM), ~51 MiB on v5e/v6e (128 MiB VMEM).
    """
    rows_needed = max(1, _cdiv(n_elems, _LANES))
    working_set = int(_tpu_vmem_bytes() * 0.40)
    per_row = 2 * _LANES * (dint * p_bytes + 2 * base_bytes)   # double buffered
    tile_r = working_set // per_row
    tile_r = max(_ROW_ALIGN, (tile_r // _ROW_ALIGN) * _ROW_ALIGN)
    tile_r = min(tile_r, _MAX_TILE_ROWS, _round_up(rows_needed, _ROW_ALIGN))
    rows_pad = _round_up(rows_needed, tile_r)
    return tile_r, rows_pad


def _fused_subspace_kernel(theta_ref, pT_ref, base_ref, out_ref):
    # theta_ref: (dint,) f32 in SMEM (scalar reads)
    # pT_ref:    (dint, TILE_R, 128) bf16 in VMEM (leading tile dim squeezed)
    # base_ref:  (TILE_R, 128) in VMEM (weight dtype)
    # out_ref:   (TILE_R, 128) in VMEM (weight dtype)
    dint = pT_ref.shape[0]
    acc = base_ref[...].astype(jnp.float32)
    if dint <= _MAX_UNROLL:
        # Small static dint -> fully unrolled VPU FMAs (no MXU for a rank-1 update).
        for d in range(dint):
            acc = acc + theta_ref[d] * pT_ref[d].astype(jnp.float32)
    else:
        # Larger dint: bound live ranges so big tiles don't spill.
        def body(d, a):
            return a + theta_ref[d] * pT_ref[d].astype(jnp.float32)
        acc = lax.fori_loop(0, dint, body, acc)
    out_ref[...] = acc.astype(out_ref.dtype)


@functools.partial(jax.jit, static_argnames=("tile_r",))
def _fused_subspace_project(theta, pT_4d, base_2d, *, tile_r):
    """out[r, c] = base[r, c] + sum_d theta[d] * pT[tile, d, r, c]  (tiled over rows)."""
    num_tiles, dint, _, lanes = pT_4d.shape
    rows = base_2d.shape[0]
    n = rows * lanes

    p_bytes = pT_4d.dtype.itemsize
    b_bytes = base_2d.dtype.itemsize
    # Double-buffered footprint: 2 x (P^T tile + base tile + out tile) + headroom.
    footprint = 2 * tile_r * lanes * (dint * p_bytes + 2 * b_bytes) + (4 << 20)
    vmem_limit = int(min(max(footprint, 16 << 20), 0.75 * _tpu_vmem_bytes()))

    return pl.pallas_call(
        _fused_subspace_kernel,
        out_shape=jax.ShapeDtypeStruct((rows, lanes), base_2d.dtype),
        grid=(num_tiles,),
        in_specs=[
            # theta lives untiled in SMEM: cheap scalar broadcasts inside the kernel.
            pl.BlockSpec(memory_space=pltpu.MemorySpace.SMEM),
            # P^T pre-tiled -> each grid step streams ONE contiguous HBM slab.
            pl.BlockSpec((None, dint, tile_r, lanes), lambda i: (i, 0, 0, 0)),
            pl.BlockSpec((tile_r, lanes), lambda i: (i, 0)),
        ],
        out_specs=pl.BlockSpec((tile_r, lanes), lambda i: (i, 0)),
        compiler_params=pltpu.CompilerParams(
            # TODO(synk): on v7x use pltpu.CORE_PARALLEL here to shard row tiles
            # across both TensorCores (doubles streaming bandwidth); kept as
            # "parallel" so the same build runs cleanly on single-TC v5e/v6e.
            dimension_semantics=("parallel",),
            vmem_limit_bytes=vmem_limit,
        ),
        cost_estimate=pl.CostEstimate(
            flops=2 * n * dint,
            transcendentals=0,
            bytes_accessed=n * dint * p_bytes + 2 * n * b_bytes + dint * 4,
        ),
    )(theta, pT_4d, base_2d)


class BaseSubspaceWrapperPallas:
    """JAX/Pallas port of BaseSubspaceWrapper (wrapping an nn.Linear-like layer).

    All theta-independent layout work (flatten, concat weight+bias, zero-pad to a
    lane/sublane-dense (rows, 128) slab, transpose + pre-tile + bf16-cast P once)
    is hoisted to __init__.
    """

    def __init__(self, weight, bias, theta, P_weight, P_bias=None):
        self.weight_shape = tuple(weight.shape)
        self.weight_dtype = weight.dtype
        self.theta = jnp.asarray(theta, jnp.float32)
        dint = self.theta.shape[0]

        nw = math.prod(self.weight_shape)
        nb = 0 if bias is None else math.prod(bias.shape)
        assert P_weight.shape == (nw, dint)
        if bias is not None:
            assert P_bias is not None and P_bias.shape == (nb, dint)
            self.bias_shape = tuple(bias.shape)
            self.bias_dtype = bias.dtype
        self._nw, self._nb = nw, nb

        n_total = nw + nb
        base_dtype = jnp.dtype(weight.dtype)
        tile_r, rows_pad = _plan_layout(
            n_total, dint, p_bytes=2, base_bytes=base_dtype.itemsize
        )
        n_pad = rows_pad * _LANES
        self._tile_r = tile_r

        # Fused, flattened, zero-padded base parameter -> (rows_pad, 128) in weight dtype.
        # TODO(synk): if bias.dtype is wider than weight.dtype the bias base is stored
        # at weight precision here; the final bias is cast back to bias.dtype in __call__.
        base_flat = weight.reshape(-1).astype(base_dtype)
        if bias is not None:
            base_flat = jnp.concatenate([base_flat, bias.reshape(-1).astype(base_dtype)])
        base_flat = jnp.pad(base_flat, (0, n_pad - n_total))
        base_2d = base_flat.reshape(rows_pad, _LANES)

        # Fused projection matrix, transposed ONCE, pre-tiled per grid step, stored bf16
        # (P^T dominates HBM bytes by a factor of dint -> ~2x less memory traffic).
        P = P_weight if bias is None else jnp.concatenate([P_weight, P_bias], axis=0)
        P = jnp.pad(P.astype(jnp.float32), ((0, n_pad - n_total), (0, 0)))
        pT = jnp.transpose(P, (1, 0)).reshape(dint, rows_pad // tile_r, tile_r, _LANES)
        pT_4d = jnp.transpose(pT, (1, 0, 2, 3)).astype(jnp.bfloat16)

        self._base_2d, self._pT_4d = jax.block_until_ready((base_2d, pT_4d))

    def __call__(self, x):
        # x is accepted but unused, exactly like the PyTorch base-class forward().
        out2d = _fused_subspace_project(
            self.theta, self._pT_4d, self._base_2d, tile_r=self._tile_r
        )
        flat = out2d.reshape(-1)                       # kernel already wrote weight dtype
        new_weight = flat[: self._nw].reshape(self.weight_shape)
        new_bias = None
        if self._nb:
            new_bias = flat[self._nw : self._nw + self._nb].reshape(self.bias_shape)
            if new_bias.dtype != self.bias_dtype:
                new_bias = new_bias.astype(self.bias_dtype)
        return (new_weight, new_bias)


if __name__ == "__main__":
    # Small deterministic setup: Linear(in=16, out=32), dint=8, batch=2.
    in_features, out_features, dint, batch = 16, 32, 8, 2

    key = jax.random.PRNGKey(0)
    k_w, k_b, k_pw, k_pb, k_theta, k_x = jax.random.split(key, 6)

    weight = jax.random.normal(k_w, (out_features, in_features), jnp.float32) * 0.1
    bias = jax.random.normal(k_b, (out_features,), jnp.float32) * 0.1
    # torch.nn.init.normal_ -> standard normal
    P_weight = jax.random.normal(k_pw, (out_features * in_features, dint), jnp.float32)
    P_bias = jax.random.normal(k_pb, (out_features, dint), jnp.float32)
    theta = jax.random.normal(k_theta, (dint,), jnp.float32) * 0.01
    x = jax.random.normal(k_x, (batch, in_features), jnp.float32)  # unused by forward

    wrapper = BaseSubspaceWrapperPallas(weight, bias, theta, P_weight, P_bias)
    new_w, new_b = wrapper(x)
    jax.block_until_ready((new_w, new_b))

    # Pure-JAX f32 reference check. P^T is stored bf16 inside the kernel, which adds
    # ~1e-4 absolute error to the delta at this scale -> tolerance 2e-3.
    ref_w = weight + (P_weight @ theta).reshape(weight.shape)
    ref_b = bias + (P_bias @ theta).reshape(bias.shape)
    assert new_w.shape == weight.shape and new_w.dtype == weight.dtype
    assert new_b.shape == bias.shape and new_b.dtype == bias.dtype
    assert jnp.allclose(new_w, ref_w, atol=2e-3, rtol=2e-3), float(
        jnp.max(jnp.abs(new_w - ref_w))
    )
    assert jnp.allclose(new_b, ref_b, atol=2e-3, rtol=2e-3), float(
        jnp.max(jnp.abs(new_b - ref_b))
    )

    print("KERNEL_OK")
</pallas_src>

<mosaic_0001>
module attributes {stable_mosaic.version = 11 : i64} {
  func.func @_fused_subspace_kernel(%arg0: i32, %arg1: memref<8xf32, #tpu.memory_space<smem>>, %arg2: memref<1x8x16x128xbf16, #tpu.memory_space<vmem>>, %arg3: memref<16x128xf32, #tpu.memory_space<vmem>>, %arg4: memref<16x128xf32, #tpu.memory_space<vmem>>) attributes {dimension_semantics = [#tpu.dimension_semantics<parallel>], iteration_bounds = array<i64: 1>, scalar_prefetch = 0 : i64, scratch_operands = 0 : i64, tpu.core_type = #tpu.core_type<tc>, window_params = [{transform_indices = @transform_0, window_bounds = array<i64: 8>}, {transform_indices = @transform_1, window_bounds = array<i64: 1, 8, 16, 128>}, {transform_indices = @transform_2, window_bounds = array<i64: 16, 128>}, {transform_indices = @transform_3, window_bounds = array<i64: 16, 128>}]} {
    %c0 = arith.constant 0 : index
    %c0_0 = arith.constant 0 : index
    %0 = vector.load %arg3[%c0, %c0_0] : memref<16x128xf32, #tpu.memory_space<vmem>>, vector<16x128xf32>
    %c0_1 = arith.constant 0 : index
    %1 = memref.load %arg1[%c0_1] : memref<8xf32, #tpu.memory_space<smem>>
    %c0_2 = arith.constant 0 : index
    %c0_3 = arith.constant 0 : index
    %c0_4 = arith.constant 0 : index
    %c0_5 = arith.constant 0 : index
    %2 = vector.load %arg2[%c0_2, %c0_3, %c0_4, %c0_5] : memref<1x8x16x128xbf16, #tpu.memory_space<vmem>>, vector<1x1x16x128xbf16>
    %3 = vector.shape_cast %2 : vector<1x1x16x128xbf16> to vector<16x128xbf16>
    %4 = arith.extf %3 : vector<16x128xbf16> to vector<16x128xf32>
    %5 = vector.broadcast %1 : f32 to vector<16x128xf32>
    %6 = arith.mulf %5, %4 : vector<16x128xf32>
    %7 = arith.addf %0, %6 : vector<16x128xf32>
    %c1 = arith.constant 1 : index
    %8 = memref.load %arg1[%c1] : memref<8xf32, #tpu.memory_space<smem>>
    %c0_6 = arith.constant 0 : index
    %c1_7 = arith.constant 1 : index
    %c0_8 = arith.constant 0 : index
    %c0_9 = arith.constant 0 : index
    %9 = vector.load %arg2[%c0_6, %c1_7, %c0_8, %c0_9] : memref<1x8x16x128xbf16, #tpu.memory_space<vmem>>, vector<1x1x16x128xbf16>
    %10 = vector.shape_cast %9 : vector<1x1x16x128xbf16> to vector<16x128xbf16>
    %11 = arith.extf %10 : vector<16x128xbf16> to vector<16x128xf32>
    %12 = vector.broadcast %8 : f32 to vector<16x128xf32>
    %13 = arith.mulf %12, %11 : vector<16x128xf32>
    %14 = arith.addf %7, %13 : vector<16x128xf32>
    %c2 = arith.constant 2 : index
    %15 = memref.load %arg1[%c2] : memref<8xf32, #tpu.memory_space<smem>>
    %c0_10 = arith.constant 0 : index
    %c2_11 = arith.constant 2 : index
    %c0_12 = arith.constant 0 : index
    %c0_13 = arith.constant 0 : index
    %16 = vector.load %arg2[%c0_10, %c2_11, %c0_12, %c0_13] : memref<1x8x16x128xbf16, #tpu.memory_space<vmem>>, vector<1x1x16x128xbf16>
    %17 = vector.shape_cast %16 : vector<1x1x16x128xbf16> to vector<16x128xbf16>
    %18 = arith.extf %17 : vector<16x128xbf16> to vector<16x128xf32>
    %19 = vector.broadcast %15 : f32 to vector<16x128xf32>
    %20 = arith.mulf %19, %18 : vector<16x128xf32>
    %21 = arith.addf %14, %20 : vector<16x128xf32>
    %c3 = arith.constant 3 : index
    %22 = memref.load %arg1[%c3] : memref<8xf32, #tpu.memory_space<smem>>
    %c0_14 = arith.constant 0 : index
    %c3_15 = arith.constant 3 : index
    %c0_16 = arith.constant 0 : index
    %c0_17 = arith.constant 0 : index
    %23 = vector.load %arg2[%c0_14, %c3_15, %c0_16, %c0_17] : memref<1x8x16x128xbf16, #tpu.memory_space<vmem>>, vector<1x1x16x128xbf16>
    %24 = vector.shape_cast %23 : vector<1x1x16x128xbf16> to vector<16x128xbf16>
    %25 = arith.extf %24 : vector<16x128xbf16> to vector<16x128xf32>
    %26 = vector.broadcast %22 : f32 to vector<16x128xf32>
    %27 = arith.mulf %26, %25 : vector<16x128xf32>
    %28 = arith.addf %21, %27 : vector<16x128xf32>
    %c4 = arith.constant 4 : index
    %29 = memref.load %arg1[%c4] : memref<8xf32, #tpu.memory_space<smem>>
    %c0_18 = arith.constant 0 : index
    %c4_19 = arith.constant 4 : index
    %c0_20 = arith.constant 0 : index
    %c0_21 = arith.constant 0 : index
    %30 = vector.load %arg2[%c0_18, %c4_19, %c0_20, %c0_21] : memref<1x8x16x128xbf16, #tpu.memory_space<vmem>>, vector<1x1x16x128xbf16>
    %31 = vector.shape_cast %30 : vector<1x1x16x128xbf16> to vector<16x128xbf16>
    %32 = arith.extf %31 : vector<16x128xbf16> to vector<16x128xf32>
    %33 = vector.broadcast %29 : f32 to vector<16x128xf32>
    %34 = arith.mulf %33, %32 : vector<16x128xf32>
    %35 = arith.addf %28, %34 : vector<16x128xf32>
    %c5 = arith.constant 5 : index
    %36 = memref.load %arg1[%c5] : memref<8xf32, #tpu.memory_space<smem>>
    %c0_22 = arith.constant 0 : index
    %c5_23 = arith.constant 5 : index
    %c0_24 = arith.constant 0 : index
    %c0_25 = arith.constant 0 : index
    %37 = vector.load %arg2[%c0_22, %c5_23, %c0_24, %c0_25] : memref<1x8x16x128xbf16, #tpu.memory_space<vmem>>, vector<1x1x16x128xbf16>
    %38 = vector.shape_cast %37 : vector<1x1x16x128xbf16> to vector<16x128xbf16>
    %39 = arith.extf %38 : vector<16x128xbf16> to vector<16x128xf32>
    %40 = vector.broadcast %36 : f32 to vector<16x128xf32>
    %41 = arith.mulf %40, %39 : vector<16x128xf32>
    %42 = arith.addf %35, %41 : vector<16x128xf32>
    %c6 = arith.constant 6 : index
    %43 = memref.load %arg1[%c6] : memref<8xf32, #tpu.memory_space<smem>>
    %c0_26 = arith.constant 0 : index
    %c6_27 = arith.constant 6 : index
    %c0_28 = arith.constant 0 : index
    %c0_29 = arith.constant 0 : index
    %44 = vector.load %arg2[%c0_26, %c6_27, %c0_28, %c0_29] : memref<1x8x16x128xbf16, #tpu.memory_space<vmem>>, vector<1x1x16x128xbf16>
    %45 = vector.shape_cast %44 : vector<1x1x16x128xbf16> to vector<16x128xbf16>
    %46 = arith.extf %45 : vector<16x128xbf16> to vector<16x128xf32>
    %47 = vector.broadcast %43 : f32 to vector<16x128xf32>
    %48 = arith.mulf %47, %46 : vector<16x128xf32>
    %49 = arith.addf %42, %48 : vector<16x128xf32>
    %c7 = arith.constant 7 : index
    %50 = memref.load %arg1[%c7] : memref<8xf32, #tpu.memory_space<smem>>
    %c0_30 = arith.constant 0 : index
    %c7_31 = arith.constant 7 : index
    %c0_32 = arith.constant 0 : index
    %c0_33 = arith.constant 0 : index
    %51 = vector.load %arg2[%c0_30, %c7_31, %c0_32, %c0_33] : memref<1x8x16x128xbf16, #tpu.memory_space<vmem>>, vector<1x1x16x128xbf16>
    %52 = vector.shape_cast %51 : vector<1x1x16x128xbf16> to vector<16x128xbf16>
    %53 = arith.extf %52 : vector<16x128xbf16> to vector<16x128xf32>
    %54 = vector.broadcast %50 : f32 to vector<16x128xf32>
    %55 = arith.mulf %54, %53 : vector<16x128xf32>
    %56 = arith.addf %49, %55 : vector<16x128xf32>
    %c0_34 = arith.constant 0 : index
    %c0_35 = arith.constant 0 : index
    %57 = vector.load %arg4[%c0_34, %c0_35] : memref<16x128xf32, #tpu.memory_space<vmem>>, vector<16x128xf32>
    tpu.vector_store %arg4[%c0_34, %c0_35], %56 {strides = array<i32>} : memref<16x128xf32, #tpu.memory_space<vmem>>, vector<16x128xf32>,
    return
  }
  func.func @transform_0(%arg0: i32) -> i32 {
    %c0_i32 = arith.constant 0 : i32
    %c0_i32_0 = arith.constant 0 : i32
    return %c0_i32 : i32
  }
  func.func @transform_1(%arg0: i32) -> (i32, i32, i32, i32) {
    %c0_i32 = arith.constant 0 : i32
    %c0_i32_0 = arith.constant 0 : i32
    %c0_i32_1 = arith.constant 0 : i32
    %c0_i32_2 = arith.constant 0 : i32
    return %arg0, %c0_i32, %c0_i32_0, %c0_i32_1 : i32, i32, i32, i32
  }
  func.func @transform_2(%arg0: i32) -> (i32, i32) {
    %c0_i32 = arith.constant 0 : i32
    %c0_i32_0 = arith.constant 0 : i32
    return %arg0, %c0_i32 : i32, i32
  }
  func.func @transform_3(%arg0: i32) -> (i32, i32) {
    %c0_i32 = arith.constant 0 : i32
    %c0_i32_0 = arith.constant 0 : i32
    return %arg0, %c0_i32 : i32, i32
  }
}

</mosaic_0001>

<llo_original>
// kernel: _fused_subspace_project.1
$region0: #{_fused_subspace_project.1}
  #allocation0 [shape = 'u32[]', space=smem, size = 0x4, offset = 0x4, fixed_abs, tag = 'smem constant byte address 0x4 - core index']
  #allocation1 [shape = 'u32[144,128]{1,0:T(1,128)}', space=vmem, size = 0x12000, scoped, tag = 'internal scratch']
  %s0 = inlined_call_operand.hbm [shape: f32[8], index: 0, kind: input, shape index: {}]
  %s1 = inlined_call_operand.hbm [shape: bf16[1,8,16,128], index: 1, kind: input, shape index: {}]
  %s2 = inlined_call_operand.hbm [shape: f32[16,128], index: 2, kind: input, shape index: {}]
  %s3 = inlined_call_operand.hbm [shape: f32[16,128], index: 3, kind: output, shape index: {}]
  %s4 = sld [smem:[#allocation0]]
  $region34: #{_fused_subspace_project.1} parent=0
    _
  %s6 = ssub.s32 1, %s4
  %s7 = scalar_select 0, %s6, %s4
  $region1: #{_fused_subspace_project.1} parent=0
    #allocation2 [shape = 'u8[512]{0}', space=smem, size = 0x200, scoped, tag = 'input window, operand 0, single buffered']
    #allocation3 [shape = 's32[1]{0}', space=sflag, size = 0x4, scoped, tag = 'scoped memory for _fused_subspace_project.1']
    #allocation4 [shape = 's32[1]{0}', space=sflag, size = 0x4, scoped, tag = 'scoped memory for _fused_subspace_project.1']
    #allocation5 [shape = 's32[1]{0}', space=sflag, size = 0x4, scoped, tag = 'scoped memory for _fused_subspace_project.1']
    #allocation6 [shape = 'u8[32768]{0}', space=vmem, size = 0x8000, scoped, tag = 'input window, operand 1, single buffered']
    #allocation7 [shape = 'u8[8192]{0}', space=vmem, size = 0x2000, scoped, tag = 'input window, operand 2, single buffered']
    #allocation8 [shape = 's32[1]{0}', space=sflag, size = 0x4, scoped, tag = 'scoped memory for _fused_subspace_project.1']
    #allocation9 [shape = 'u8[8192]{0}', space=vmem, size = 0x2000, scoped, tag = 'output window, operand 0, single buffered']
    %8 = vsyncpa [#allocation5], 0
    %9 = vsyncpa [#allocation3], 0
    %10 = vsyncpa [#allocation8], 0
    %11 = vsyncpa [#allocation4], 0
    // Predicated region
    $region2: #{_fused_subspace_project.1} parent=1 // pred_check
      _
    $region3: #{_fused_subspace_project.1} parent=1 // pred_check_branch
      %13 = sbr.rel (0) target = $region5
    $region4: #{_fused_subspace_project.1} parent=1 // pred_region
      %s15 = ssub.s32 16, 16
      %16 = vsyncadd [#allocation5], %s15
      %19 = dma.hbm_to_smem %s0, 16, [#allocation2], [#allocation5]
    $region5: #{_fused_subspace_project.1} parent=1 // pred_fallthru
      _
    // Predicated region
    $region6: #{_fused_subspace_project.1} parent=1 // pred_check
      _
    $region7: #{_fused_subspace_project.1} parent=1 // pred_check_branch
      %21 = sbr.rel (0) target = $region9
    $region8: #{_fused_subspace_project.1} parent=1 // pred_region
      %s23 = ssub.s32 1024, 1024
      %24 = vsyncadd [#allocation3], %s23
      %s25 = sshll.u32 [#allocation6], 4
      %s26 = int_to_ptr.vmem [resolvable:$true] %s25
      %31 = dma.hbm_to_vmem [thread:$0]  %s1, 1024, %s26, [#allocation3], 64, 64, 4
    $region9: #{_fused_subspace_project.1} parent=1 // pred_fallthru
      _
    // Predicated region
    $region10: #{_fused_subspace_project.1} parent=1 // pred_check
      _
    $region11: #{_fused_subspace_project.1} parent=1 // pred_check_branch
      %33 = sbr.rel (0) target = $region13
    $region12: #{_fused_subspace_project.1} parent=1 // pred_region
      %s35 = ssub.s32 256, 256
      %36 = vsyncadd [#allocation8], %s35
      %s37 = sshll.u32 [#allocation7], 4
      %s38 = int_to_ptr.vmem [resolvable:$true] %s37
      %43 = dma.hbm_to_vmem [thread:$0]  %s2, 256, %s38, [#allocation8], 128, 128, 8
    $region13: #{_fused_subspace_project.1} parent=1 // pred_fallthru
      _
    // Predicated region
    $region14: #{_fused_subspace_project.1} parent=1 // pred_check
      _
    $region15: #{_fused_subspace_project.1} parent=1 // pred_check_branch
      %45 = sbr.rel (0) target = $region17
    $region16: #{_fused_subspace_project.1} parent=1 // pred_region
      %46 = dma.done [#allocation5], 16
    $region17: #{_fused_subspace_project.1} parent=1 // pred_fallthru
      _
    // Predicated region
    $region18: #{_fused_subspace_project.1} parent=1 // pred_check
      _
    $region19: #{_fused_subspace_project.1} parent=1 // pred_check_branch
      %48 = sbr.rel (0) target = $region21
    $region20: #{_fused_subspace_project.1} parent=1 // pred_region
      %49 = dma.done [#allocation3], 1024
    $region21: #{_fused_subspace_project.1} parent=1 // pred_fallthru
      _
    // Predicated region
    $region22: #{_fused_subspace_project.1} parent=1 // pred_check
      _
    $region23: #{_fused_subspace_project.1} parent=1 // pred_check_branch
      %51 = sbr.rel (0) target = $region25
    $region24: #{_fused_subspace_project.1} parent=1 // pred_region
      %52 = dma.done [#allocation8], 256
    $region25: #{_fused_subspace_project.1} parent=1 // pred_fallthru
      _
    %53 = sfence
    %v54 = vld [vmem:[#allocation7] sm:$0xff]
    %v55 = vld [vmem:[#allocation7 + $0x8] sm:$0xff]
    %s56 = sld [smem:[#allocation2]]
    %v57 = vld [vmem:[#allocation6] sm:$0xf]
    %v58 = vld [vmem:[#allocation6 + $0x4] sm:$0xf]
    %v59 = vunpack.c.l.bf16 %v57
    %v60 = vunpack.c.l.bf16 %v58
    %v61 = vstv %s56
    %v62 = vmul.f32 %v61, %v59
    %v63 = vmul.f32 %v61, %v60
    %v64 = vadd.f32 %v54, %v62
    %v65 = vadd.f32 %v55, %v63
    %s66 = sld [smem:[#allocation2 + $0x1]]
    %s67 = scalar_lea.vmem [#allocation6], 8
    %v68 = vld [vmem:[%s67] sm:$0xf]
    %v69 = vld [vmem:[%s67 + $0x4] sm:$0xf]
    %v70 = vunpack.c.l.bf16 %v68
    %v71 = vunpack.c.l.bf16 %v69
    %v72 = vstv %s66
    %v73 = vmul.f32 %v72, %v70
    %v74 = vmul.f32 %v72, %v71
    %v75 = vadd.f32 %v64, %v73
    %v76 = vadd.f32 %v65, %v74
    %s77 = sld [smem:[#allocation2 + $0x2]]
    %s78 = scalar_lea.vmem [#allocation6], 16
    %v79 = vld [vmem:[%s78] sm:$0xf]
    %v80 = vld [vmem:[%s78 + $0x4] sm:$0xf]
    %v81 = vunpack.c.l.bf16 %v79
    %v82 = vunpack.c.l.bf16 %v80
    %v83 = vstv %s77
    %v84 = vmul.f32 %v83, %v81
    %v85 = vmul.f32 %v83, %v82
    %v86 = vadd.f32 %v75, %v84
    %v87 = vadd.f32 %v76, %v85
    %s88 = sld [smem:[#allocation2 + $0x3]]
    %s89 = scalar_lea.vmem [#allocation6], 24
    %v90 = vld [vmem:[%s89] sm:$0xf]
    %v91 = vld [vmem:[%s89 + $0x4] sm:$0xf]
    %v92 = vunpack.c.l.bf16 %v90
    %v93 = vunpack.c.l.bf16 %v91
    %v94 = vstv %s88
    %v95 = vmul.f32 %v94, %v92
    %v96 = vmul.f32 %v94, %v93
    %v97 = vadd.f32 %v86, %v95
    %v98 = vadd.f32 %v87, %v96
    %s99 = sld [smem:[#allocation2 + $0x4]]
    %s100 = scalar_lea.vmem [#allocation6], 32
    %v101 = vld [vmem:[%s100] sm:$0xf]
    %v102 = vld [vmem:[%s100 + $0x4] sm:$0xf]
    %v103 = vunpack.c.l.bf16 %v101
    %v104 = vunpack.c.l.bf16 %v102
    %v105 = vstv %s99
    %v106 = vmul.f32 %v105, %v103
    %v107 = vmul.f32 %v105, %v104
    %v108 = vadd.f32 %v97, %v106
    %v109 = vadd.f32 %v98, %v107
    %s110 = sld [smem:[#allocation2 + $0x5]]
    %s111 = scalar_lea.vmem [#allocation6], 40
    %v112 = vld [vmem:[%s111] sm:$0xf]
    %v113 = vld [vmem:[%s111 + $0x4] sm:$0xf]
    %v114 = vunpack.c.l.bf16 %v112
    %v115 = vunpack.c.l.bf16 %v113
    %v116 = vstv %s110
    %v117 = vmul.f32 %v116, %v114
    %v118 = vmul.f32 %v116, %v115
    %v119 = vadd.f32 %v108, %v117
    %v120 = vadd.f32 %v109, %v118
    %s121 = sld [smem:[#allocation2 + $0x6]]
    %s122 = scalar_lea.vmem [#allocation6], 48
    %v123 = vld [vmem:[%s122] sm:$0xf]
    %v124 = vld [vmem:[%s122 + $0x4] sm:$0xf]
    %v125 = vunpack.c.l.bf16 %v123
    %v126 = vunpack.c.l.bf16 %v124
    %v127 = vstv %s121
    %v128 = vmul.f32 %v127, %v125
    %v129 = vmul.f32 %v127, %v126
    %v130 = vadd.f32 %v119, %v128
    %v131 = vadd.f32 %v120, %v129
    %s132 = sld [smem:[#allocation2 + $0x7]]
    %s133 = scalar_lea.vmem [#allocation6], 56
    %v134 = vld [vmem:[%s133] sm:$0xf]
    %v135 = vld [vmem:[%s133 + $0x4] sm:$0xf]
    %v136 = vunpack.c.l.bf16 %v134
    %v137 = vunpack.c.l.bf16 %v135
    %v138 = vstv %s132
    %v139 = vmul.f32 %v138, %v136
    %v140 = vmul.f32 %v138, %v137
    %v141 = vadd.f32 %v130, %v139
    %v142 = vadd.f32 %v131, %v140
    %143 = vst [vmem:[#allocation9] sm:$0xff] %v141
    %144 = vst [vmem:[#allocation9 + $0x8] sm:$0xff] %v142
    // Predicated region
    $region26: #{_fused_subspace_project.1} parent=1 // pred_check
      _
    $region27: #{_fused_subspace_project.1} parent=1 // pred_check_branch
      %146 = sbr.rel (0) target = $region29
    $region28: #{_fused_subspace_project.1} parent=1 // pred_region
      %s148 = ssub.s32 256, 256
      %149 = vsyncadd [#allocation4], %s148
      %s150 = sshll.u32 [#allocation9], 4
      %s151 = int_to_ptr.vmem [resolvable:$true] %s150
      %156 = dma.vmem_to_hbm [thread:$0]  %s151, 256, %s3, [#allocation4], 128, 128, 8
    $region29: #{_fused_subspace_project.1} parent=1 // pred_fallthru
      _
    // Predicated region
    $region30: #{_fused_subspace_project.1} parent=1 // pred_check
      _
    $region31: #{_fused_subspace_project.1} parent=1 // pred_check_branch
      %158 = sbr.rel (0) target = $region33
    $region32: #{_fused_subspace_project.1} parent=1 // pred_region
      %159 = dma.done [#allocation4], 256
    $region33: #{_fused_subspace_project.1} parent=1 // pred_fallthru
      _
    %160 = vsyncpa [#allocation3], 1
    %161 = vsyncpa [#allocation8], 1
    %162 = vsyncpa [#allocation4], 1
    %163 = vsyncpa [#allocation5], 1

</llo_original>
